<compile_context>
chip_gen: v7x
topology: tpu7x:2x2x1
jax: 0.10.0
libtpu: 0.0.40
codegen_flags: <defaults>
</compile_context>

<pallas_src>
import functools

import jax
import jax.numpy as jnp
from jax.experimental import pallas as pl
from jax.experimental.pallas import tpu as pltpu


def _ring_loss_kernel(radius_ref, x_ref, out_ref, acc_ref, *,
                      n_valid, n_padded, tile_rows, tiles_per_stripe):
    """One grid step: accumulate sum of (||x_i|| - radius)^2 over a batch tile.

    radius_ref : SMEM (1,)            float32  ring radius (learnable scalar)
    x_ref      : VMEM (tile_rows, D)  features (f32 or bf16; upcast inside)
    out_ref    : VMEM (1, 1)          per-stripe partial sum (written last step)
    acc_ref    : VMEM (1, 1)          running-sum scratch accumulator
    """
    c = pl.program_id(0)           # stripe / TensorCore axis ("parallel")
    i = pl.program_id(1)           # batch-tile axis within stripe ("arbitrary")

    @pl.when(i == 0)
    def _():
        acc_ref[...] = jnp.zeros_like(acc_ref)

    r = radius_ref[0]                                    # hoist SMEM scalar read
    x = x_ref[...].astype(jnp.float32)                   # (tile_rows, D)
    sq_sum = jnp.sum(x * x, axis=1, keepdims=True)       # (tile_rows, 1)
    diff = jnp.sqrt(sq_sum) - r                          # (tile_rows, 1)
    contrib = diff * diff

    if n_padded != n_valid:
        # Zero-padded rows would otherwise contribute radius**2 each.
        row0 = (c * tiles_per_stripe + i) * tile_rows
        row_ids = row0 + jax.lax.broadcasted_iota(jnp.int32, contrib.shape, 0)
        contrib = jnp.where(row_ids < n_valid, contrib, 0.0)

    acc_ref[...] += jnp.sum(contrib, axis=(0, 1), keepdims=True)

    @pl.when(i == pl.num_programs(1) - 1)
    def _():
        out_ref[...] = acc_ref[...]


def ring_loss(x, radius, *, batch_tile=None, num_stripes=2):
    """RingLoss forward with a Pallas TPU kernel.

    x      : (N, D) float32 or bfloat16 features
    radius : (1,)   learnable scalar parameter
    returns: scalar float32 loss = mean_i (||x_i||_2 - radius)^2
    """
    n, d = x.shape
    itemsize = jnp.dtype(x.dtype).itemsize
    row_align = {4: 8, 2: 16, 1: 32}.get(itemsize, 8)   # sublane packing

    # --- choose the batch tile: as big as an ~8 MiB per-buffer VMEM budget
    # allows (Pallas double-buffers the input), aligned to sublane packing. ---
    if batch_tile is None:
        d_lanes = ((d + 127) // 128) * 128               # lane-padded width
        bytes_per_row = max(d_lanes * itemsize, 1)
        budget = 8 * 1024 * 1024                         # per input buffer
        batch_tile = (budget // bytes_per_row) // row_align * row_align
        batch_tile = int(min(max(batch_tile, row_align), 16384))
    else:
        batch_tile = int(-(-int(batch_tile) // row_align) * row_align)

    # Don't make the tile bigger than one stripe's worth of (aligned) rows.
    rows_per_stripe = -(-n // num_stripes)
    rows_per_stripe = -(-rows_per_stripe // row_align) * row_align
    batch_tile = max(min(batch_tile, rows_per_stripe), row_align)

    tiles_per_stripe = -(-rows_per_stripe // batch_tile)
    n_padded = num_stripes * tiles_per_stripe * batch_tile
    if n_padded != n:
        x = jnp.pad(x, ((0, n_padded - n), (0, 0)))

    radius = jnp.asarray(radius, jnp.float32).reshape((1,))

    kernel = functools.partial(
        _ring_loss_kernel,
        n_valid=n, n_padded=n_padded,
        tile_rows=batch_tile, tiles_per_stripe=tiles_per_stripe,
    )

    partials = pl.pallas_call(
        kernel,
        out_shape=jax.ShapeDtypeStruct((num_stripes, 1, 1), jnp.float32),
        grid=(num_stripes, tiles_per_stripe),
        in_specs=[
            pl.BlockSpec(memory_space=pltpu.SMEM),                    # radius
            pl.BlockSpec((batch_tile, d),
                         lambda c, i: (c * tiles_per_stripe + i, 0)),  # x tile
        ],
        out_specs=pl.BlockSpec((None, 1, 1), lambda c, i: (c, 0, 0)),
        scratch_shapes=[pltpu.VMEM((1, 1), jnp.float32)],
        compiler_params=pltpu.CompilerParams(
            dimension_semantics=("parallel", "arbitrary"),
            vmem_limit_bytes=32 * 1024 * 1024,
        ),
    )(radius, x)

    return jnp.sum(partials) / n


if __name__ == "__main__":
    key = jax.random.PRNGKey(0)

    # Small shapes consistent with RingLoss usage: (batch, feat_dim).
    N, D = 16, 32
    x = jax.random.normal(key, (N, D), dtype=jnp.float32)

    # Deterministic parameter init, matching nn.Parameter(torch.ones(1)).
    radius = jnp.ones((1,), dtype=jnp.float32)

    loss = jax.block_until_ready(ring_loss(x, radius))
    ref = jnp.mean((jnp.linalg.norm(x, axis=1) - radius[0]) ** 2)
    assert jnp.allclose(loss, ref, rtol=1e-5, atol=1e-5), (loss, ref)

    # Ragged batch exercises the padding + in-kernel row-mask path.
    x2 = jax.random.normal(jax.random.PRNGKey(1), (13, D), dtype=jnp.float32)
    loss2 = jax.block_until_ready(ring_loss(x2, radius))
    ref2 = jnp.mean((jnp.linalg.norm(x2, axis=1) - radius[0]) ** 2)
    assert jnp.allclose(loss2, ref2, rtol=1e-5, atol=1e-5), (loss2, ref2)

    # bf16 features (halved HBM traffic; f32 math inside the kernel).
    x3 = jax.random.normal(jax.random.PRNGKey(2), (32, D), dtype=jnp.bfloat16)
    loss3 = jax.block_until_ready(ring_loss(x3, radius))
    ref3 = jnp.mean((jnp.linalg.norm(x3.astype(jnp.float32), axis=1)
                     - radius[0]) ** 2)
    assert jnp.allclose(loss3, ref3, rtol=1e-2, atol=1e-2), (loss3, ref3)

    print("KERNEL_OK")
</pallas_src>

<mosaic_0001>
module attributes {stable_mosaic.version = 11 : i64} {
  func.func @_ring_loss_kernel(%arg0: i32, %arg1: i32, %arg2: memref<1xf32, #tpu.memory_space<smem>>, %arg3: memref<8x32xf32, #tpu.memory_space<vmem>>, %arg4: memref<1x1x1xf32, #tpu.memory_space<vmem>>, %arg5: memref<1x1xf32, #tpu.memory_space<vmem>>) attributes {dimension_semantics = [#tpu.dimension_semantics<parallel>, #tpu.dimension_semantics<arbitrary>], iteration_bounds = array<i64: 2, 1>, scalar_prefetch = 0 : i64, scratch_operands = 1 : i64, tpu.core_type = #tpu.core_type<tc>, window_params = [{transform_indices = @transform_0, window_bounds = array<i64: 1>}, {transform_indices = @transform_1, window_bounds = array<i64: 8, 32>}, {transform_indices = @transform_2, window_bounds = array<i64: 1, 1, 1>}]} {
    %c0_i32 = arith.constant 0 : i32
    %0 = arith.cmpi eq, %arg1, %c0_i32 : i32
    %1 = arith.extui %0 : i1 to i32
    %c0_i32_0 = arith.constant 0 : i32
    %2 = arith.cmpi ne, %1, %c0_i32_0 : i32
    scf.if %2 {
      %cst_10 = arith.constant 0.000000e+00 : f32
      %23 = vector.broadcast %cst_10 : f32 to vector<1x1xf32>
      %c0_11 = arith.constant 0 : index
      %c0_12 = arith.constant 0 : index
      %24 = vector.load %arg5[%c0_11, %c0_12] : memref<1x1xf32, #tpu.memory_space<vmem>>, vector<1x1xf32>
      tpu.vector_store %arg5[%c0_11, %c0_12], %23 {strides = array<i32>} : memref<1x1xf32, #tpu.memory_space<vmem>>, vector<1x1xf32>,
    } else {
    }
    %c0 = arith.constant 0 : index
    %3 = memref.load %arg2[%c0] : memref<1xf32, #tpu.memory_space<smem>>
    %c0_1 = arith.constant 0 : index
    %c0_2 = arith.constant 0 : index
    %4 = vector.load %arg3[%c0_1, %c0_2] : memref<8x32xf32, #tpu.memory_space<vmem>>, vector<8x32xf32>
    %5 = arith.mulf %4, %4 : vector<8x32xf32>
    %cst = arith.constant dense<0.000000e+00> : vector<8xf32>
    %6 = vector.multi_reduction <add>, %5, %cst [1] : vector<8x32xf32> to vector<8xf32>
    %7 = vector.shape_cast %6 : vector<8xf32> to vector<8x1xf32>
    %8 = math.sqrt %7 : vector<8x1xf32>
    %9 = vector.broadcast %3 : f32 to vector<8x1xf32>
    %10 = arith.subf %8, %9 : vector<8x1xf32>
    %11 = arith.mulf %10, %10 : vector<8x1xf32>
    %c0_3 = arith.constant 0 : index
    %c0_4 = arith.constant 0 : index
    %12 = vector.load %arg5[%c0_3, %c0_4] : memref<1x1xf32, #tpu.memory_space<vmem>>, vector<1x1xf32>
    %13 = vector.shape_cast %11 : vector<8x1xf32> to vector<1x8x1xf32>
    %cst_5 = arith.constant dense<0.000000e+00> : vector<1xf32>
    %14 = vector.multi_reduction <add>, %13, %cst_5 [1, 2] : vector<1x8x1xf32> to vector<1xf32>
    %15 = vector.shape_cast %14 : vector<1xf32> to vector<1x1x1xf32>
    %16 = vector.extract %15[0, 0, 0] : f32 from vector<1x1x1xf32>
    %17 = vector.broadcast %16 : f32 to vector<1x1xf32>
    %18 = arith.addf %12, %17 : vector<1x1xf32>
    %c0_6 = arith.constant 0 : index
    %c0_7 = arith.constant 0 : index
    %19 = vector.load %arg5[%c0_6, %c0_7] : memref<1x1xf32, #tpu.memory_space<vmem>>, vector<1x1xf32>
    tpu.vector_store %arg5[%c0_6, %c0_7], %18 {strides = array<i32>} : memref<1x1xf32, #tpu.memory_space<vmem>>, vector<1x1xf32>,
    %c0_i32_8 = arith.constant 0 : i32
    %20 = arith.cmpi eq, %arg1, %c0_i32_8 : i32
    %21 = arith.extui %20 : i1 to i32
    %c0_i32_9 = arith.constant 0 : i32
    %22 = arith.cmpi ne, %21, %c0_i32_9 : i32
    scf.if %22 {
      %c0_10 = arith.constant 0 : index
      %c0_11 = arith.constant 0 : index
      %23 = vector.load %arg5[%c0_10, %c0_11] : memref<1x1xf32, #tpu.memory_space<vmem>>, vector<1x1xf32>
      %c0_12 = arith.constant 0 : index
      %c0_13 = arith.constant 0 : index
      %c0_14 = arith.constant 0 : index
      %24 = vector.load %arg4[%c0_12, %c0_13, %c0_14] : memref<1x1x1xf32, #tpu.memory_space<vmem>>, vector<1x1x1xf32>
      %25 = vector.shape_cast %24 : vector<1x1x1xf32> to vector<1x1xf32>
      %26 = vector.shape_cast %23 : vector<1x1xf32> to vector<1x1x1xf32>
      tpu.vector_store %arg4[%c0_12, %c0_13, %c0_14], %26 {strides = array<i32>} : memref<1x1x1xf32, #tpu.memory_space<vmem>>, vector<1x1x1xf32>,
    } else {
    }
    return
  }
  func.func @transform_0(%arg0: i32, %arg1: i32) -> i32 {
    %c0_i32 = arith.constant 0 : i32
    %c0_i32_0 = arith.constant 0 : i32
    return %c0_i32 : i32
  }
  func.func @transform_1(%arg0: i32, %arg1: i32) -> (i32, i32) {
    %c1_i32 = arith.constant 1 : i32
    %0 = arith.muli %arg0, %c1_i32 : i32
    %1 = arith.addi %0, %arg1 : i32
    %c0_i32 = arith.constant 0 : i32
    %c0_i32_0 = arith.constant 0 : i32
    return %1, %c0_i32 : i32, i32
  }
  func.func @transform_2(%arg0: i32, %arg1: i32) -> (i32, i32, i32) {
    %c0_i32 = arith.constant 0 : i32
    %c0_i32_0 = arith.constant 0 : i32
    %c0_i32_1 = arith.constant 0 : i32
    return %arg0, %c0_i32, %c0_i32_0 : i32, i32, i32
  }
}

</mosaic_0001>

<llo_original>
// kernel: tpu_custom_call.1
$region0: #{tpu_custom_call.1}
  #allocation0 [shape = 'u32[]', space=smem, size = 0x4, offset = 0x4, fixed_abs, tag = 'smem constant byte address 0x4 - core index']
  #allocation1 [shape = 'u32[144,128]{1,0:T(1,128)}', space=vmem, size = 0x12000, scoped, tag = 'internal scratch']
  #allocation2 [shape = 'f32[1,1]{1,0:T(1,128)}', space=vmem, size = 0x200, scoped, tag = 'scratch operand']
  #allocation3 [shape = 'f32[1]{0:T(128)S(6)}', space=smem, size = 0x200, scoped, tag = 'scoped memory for tpu_custom_call.1']
  %s0 = inlined_call_operand.<no memory space> [shape: f32[1], index: 0, kind: input, shape index: {}]
  %s1 = inlined_call_operand.hbm [shape: f32[16,32], index: 1, kind: input, shape index: {}]
  %s2 = inlined_call_operand.vmem [shape: f32[2,1,1], index: 2, kind: output, shape index: {}]
  %s3 = sld [smem:[#allocation0]]
  $region53: #{tpu_custom_call.1} parent=0
    _
  %s5 = ssub.s32 1, %s3
  %s6 = scalar_select 0, %s5, %s3
  %7 = sst [smem:[#allocation3]] %s0
  $region1: #{tpu_custom_call.1} parent=0
    #allocation4 [shape = 'u8[8192]{0}', space=vmem, size = 0x2000, scoped, tag = 'input window, operand 1']
    #allocation5 [shape = 's32[2]{0}', space=sflag, size = 0x8, scoped, tag = 'scoped memory for tpu_custom_call.1']
    %8 = vsyncpa [#allocation5], 0
    %s9 = scalar_lea.sflag [#allocation5], 1
    %10 = vsyncpa %s9, 0
    loop: start=0, step=1, limit=4
    $region2: #{tpu_custom_call.1} parent=1 // loop_pre_header
      _
    $region3: #{tpu_custom_call.1} parent=1 // loop_header
      %s12 = sphi 0, %s16
      %p13 = scmp.ge.s32.totalorder %s12, 4
      %s19 = sphi 0, %s31
      %s20 = sphi 0, %s27
      %s21 = sphi 0, %s19
      %s22 = sphi 0, %s20
      %s23 = sphi 0, %s21
      %s24 = sphi 0, %s22
      %s32 = sphi 0, %s32
      %s34 = sphi 0, %s32
      %s35 = sphi 0, %s34
      %s49 = sphi 0, %s35
      %s57 = sphi 0, %s59
      %s60 = sphi 0, %s57
      %s61 = sphi 0, %s60
      %s77 = sphi 0, %s61
      %s83 = sphi 0, %s85
      %s86 = sphi 0, %s83
      %s87 = sphi 0, %s86
      %s103 = sphi 0, %s87
    $region4: #{tpu_custom_call.1} parent=1 // loop_header_branch
      %15 = sbr.rel (%p13) target = $region8
    $region5: #{tpu_custom_call.1} parent=1 // loop_body
      %s17 = ssub.s32 %s12, 1
      %s18 = ssub.s32 %s12, 2
      %s25 = sadd.s32 1, %s20
      %p26 = scmp.ge.s32.totalorder %s25, 1
      %s27 = scalar_select %p26, 0, %s25
      %s28 = sadd.s32 1, %s19
      %s29 = scalar_select %p26, %s28, %s19
      %p30 = scmp.ge.s32.totalorder %s29, 2
      %s31 = scalar_select %p30, 0, %s29
      %s33 = sadd.s32 %s32, 1
      %p36 = scmp.eq.s32.totalorder %s12, 1
      %p37 = scmp.ne.s32.totalorder %s32, %s34
      %p38 = scmp.eq.s32.totalorder %s12, 0
      %p39 = por %p37, %p38
      %p40 = scmp.ne.s32.totalorder %s32, %s34
      %p41 = scmp.eq.s32.totalorder %s17, 1
      %p42 = por %p40, %p41
      %p43 = scmp.ne.s32.totalorder %s34, %s35
      %p44 = scmp.eq.s32.totalorder %s17, 0
      %p45 = por %p43, %p44
      %p46 = scmp.ne.s32.totalorder %s34, %s35
      %p47 = scmp.eq.s32.totalorder %s18, 1
      %p48 = por %p46, %p47
      %p50 = scmp.ne.s32.totalorder %s35, %s49
      %p51 = scmp.eq.s32.totalorder %s18, 0
      %p52 = por %p50, %p51
      %s53 = sadd.s32 %s19, %s20
      %s54 = sadd.s32 %s31, %s27
      %s55 = ssub.s32 %s53, %s54
      %p56 = scmp.eq.s32.totalorder %s55, 0
      %s58 = sadd.s32 %s57, 1
      %s59 = scalar_select %p56, %s57, %s58
      %p62 = pneg %p56
      %p63 = scmp.eq.s32.totalorder %s12, 1
      %p64 = por %p62, %p63
      %p65 = scmp.ne.s32.totalorder %s57, %s60
      %p66 = scmp.eq.s32.totalorder %s12, 0
      %p67 = por %p65, %p66
      %p68 = scmp.ne.s32.totalorder %s57, %s60
      %p69 = scmp.eq.s32.totalorder %s17, 1
      %p70 = por %p68, %p69
      %p71 = scmp.ne.s32.totalorder %s60, %s61
      %p72 = scmp.eq.s32.totalorder %s17, 0
      %p73 = por %p71, %p72
      %p74 = scmp.ne.s32.totalorder %s60, %s61
      %p75 = scmp.eq.s32.totalorder %s18, 1
      %p76 = por %p74, %p75
      %p78 = scmp.ne.s32.totalorder %s61, %s77
      %p79 = scmp.eq.s32.totalorder %s18, 0
      %p80 = por %p78, %p79
      %s81 = ssub.s32 %s19, %s31
      %p82 = scmp.eq.s32.totalorder %s81, 0
      %s84 = sadd.s32 %s83, 1
      %s85 = scalar_select %p82, %s83, %s84
      %p88 = pneg %p82
      %p89 = scmp.eq.s32.totalorder %s12, 1
      %p90 = por %p88, %p89
      %p91 = scmp.ne.s32.totalorder %s83, %s86
      %p92 = scmp.eq.s32.totalorder %s12, 0
      %p93 = por %p91, %p92
      %p94 = scmp.ne.s32.totalorder %s83, %s86
      %p95 = scmp.eq.s32.totalorder %s17, 1
      %p96 = por %p94, %p95
      %p97 = scmp.ne.s32.totalorder %s86, %s87
      %p98 = scmp.eq.s32.totalorder %s17, 0
      %p99 = por %p97, %p98
      %p100 = scmp.ne.s32.totalorder %s86, %s87
      %p101 = scmp.eq.s32.totalorder %s18, 1
      %p102 = por %p100, %p101
      %p104 = scmp.ne.s32.totalorder %s87, %s103
      %p105 = scmp.eq.s32.totalorder %s18, 0
      %p106 = por %p104, %p105
      %p107 = scmp.le.s32.totalorder 1, %s12
      %p108 = scmp.lt.s32.totalorder %s12, 3
      %p109 = pnand %p107, %p108
      %p110 = pneg %p109
      // Predicated region
      $region9: #{tpu_custom_call.1} parent=5 // pred_check
        _
      $region10: #{tpu_custom_call.1} parent=5 // pred_check_branch
        %112 = sbr.rel (%p109) target = $region12
      $region11: #{tpu_custom_call.1} parent=5 // pred_region
        %s113 = ssub.s32 %s12, 1
        // Predicated region
        $region13: #{tpu_custom_call.1} parent=11 // pred_check
          %p114 = pneg %p45
        $region14: #{tpu_custom_call.1} parent=11 // pred_check_branch
          %116 = sbr.rel (%p114) target = $region16
        $region15: #{tpu_custom_call.1} parent=11 // pred_region
          _
        $region16: #{tpu_custom_call.1} parent=11 // pred_fallthru
          _
      $region12: #{tpu_custom_call.1} parent=5 // pred_fallthru
        _
      %p117 = scmp.lt.s32.totalorder %s12, 2
      // Predicated region
      $region17: #{tpu_custom_call.1} parent=5 // pred_check
        %p118 = pneg %p117
      $region18: #{tpu_custom_call.1} parent=5 // pred_check_branch
        %120 = sbr.rel (%p118) target = $region20
      $region19: #{tpu_custom_call.1} parent=5 // pred_region
        // Predicated region
        $region21: #{tpu_custom_call.1} parent=19 // pred_check
          %p121 = pneg %p67
        $region22: #{tpu_custom_call.1} parent=19 // pred_check_branch
          %123 = sbr.rel (%p121) target = $region24
        $region23: #{tpu_custom_call.1} parent=19 // pred_region
          %s124 = sand.u32 %s57, 1
          %s125 = scalar_lea.sflag [#allocation5], %s124
          %s126 = sand.u32 %s57, 1
          %s127 = smul.addr %s126, 8
          %s128 = scalar_lea.vmem [#allocation4], %s127
          %s129 = sadd.s32 %s19, %s20
          %s131 = ssub.s32 128, 128
          %132 = vsyncadd %s125, %s131
          %s133 = smul.addr %s129, 128
          %s134 = scalar_lea.hbm %s1, %s133
          %s136 = sshll.u32 %s128, 4
          %s137 = int_to_ptr.vmem [resolvable:$true] %s136
          %139 = dma.hbm_to_vmem [thread:$0]  %s134, 128, %s137, %s125
        $region24: #{tpu_custom_call.1} parent=19 // pred_fallthru
          _
      $region20: #{tpu_custom_call.1} parent=5 // pred_fallthru
        _
      %p140 = scmp.le.s32.totalorder 1, %s12
      %p141 = scmp.lt.s32.totalorder %s12, 3
      %p142 = pnand %p140, %p141
      %p143 = pneg %p142
      // Predicated region
      $region25: #{tpu_custom_call.1} parent=5 // pred_check
        _
      $region26: #{tpu_custom_call.1} parent=5 // pred_check_branch
        %145 = sbr.rel (%p142) target = $region28
      $region27: #{tpu_custom_call.1} parent=5 // pred_region
        %s146 = ssub.s32 %s12, 1
        %s147 = sand.u32 %s60, 1
        %s148 = scalar_lea.sflag [#allocation5], %s147
        %s149 = sand.u32 %s60, 1
        %s150 = smul.addr %s149, 8
        %s151 = scalar_lea.vmem [#allocation4], %s150
        // Predicated region
        $region29: #{tpu_custom_call.1} parent=27 // pred_check
          %p152 = pneg %p73
        $region30: #{tpu_custom_call.1} parent=27 // pred_check_branch
          %154 = sbr.rel (%p152) target = $region32
        $region31: #{tpu_custom_call.1} parent=27 // pred_region
          %155 = dma.done %s148, 128
        $region32: #{tpu_custom_call.1} parent=27 // pred_fallthru
          _
        %p156 = pneg %p45
        %p157 = pneg %p42
        %s158 = sand.u32 %s60, 1
        %s159 = scalar_lea.sflag [#allocation5], %s158
        %s160 = sand.u32 %s60, 1
        %s161 = smul.addr %s160, 8
        %s162 = scalar_lea.vmem [#allocation4], %s161
        %p163 = pneg %p73
        %p164 = pneg %p70
        %p165 = pneg %p99
        %p166 = pneg %p96
        %p167 = scmp.lt.s32.totalorder %s21, 1
        %s168 = scalar_select %p167, %s21, 1
        %s169 = scalar_lea.vmem %s2, %s168
        %s170 = sadd.s32 %s21, %s22
        %p171 = scmp.lt.s32.totalorder %s21, 1
        %s172 = scalar_select %p171, %s21, 1
        %s173 = scalar_lea.vmem %s2, %s172
        %p174 = scmp.eq.s32.totalorder %s22, 0
        // Predicated region
        $region33: #{tpu_custom_call.1} parent=27 // pred_check
          %p175 = pneg %p174
        $region34: #{tpu_custom_call.1} parent=27 // pred_check_branch
          %177 = sbr.rel (%p175) target = $region36
        $region35: #{tpu_custom_call.1} parent=27 // pred_region
          %vm178 = vcmask 0
          %179 = vst.msk [vmem:[#allocation2] sm:$0x1] %vm178, 0.0
        $region36: #{tpu_custom_call.1} parent=27 // pred_fallthru
          _
        %s180 = sld [smem:[#allocation3]]
        %v181 = vld [vmem:[%s151] sm:$0xff]
        %v182 = vmul.f32 %v181, %v181
        %vm183 = vcmask 261120
        %v184 = vsel %vm183, %v182, 0.0
        %185 = vadd.xlane.f32.xlu0 %v184
        %v186 = vpop.xlane.xlu0 %185
        %v187 = vrsqrt.pop %v186
        %v188 = vmul.f32 %v186, %v187
        %vm189 = vcmp.eq.f32.partialorder %v186, inf
        %v190 = vsel %vm189, %v186, %v188
        %vm191 = vcmp.eq.f32.partialorder %v186, 0.0
        %v192 = vand.u32 %v186, 2147483648
        %v193 = vsel %vm191, %v192, %v190
        %v194 = vstv %s180
        %v195 = vsub.f32 %v193, %v194
        %v196 = vmul.f32 %v195, %v195
        %v197 = vld [vmem:[#allocation2] sm:$0x1]
        %vm198 = vcmask 7168
        %v199 = vsel %vm198, %v196, 0.0
        %200 = vadd.xlane.f32.xlu0 %v199
        %v201 = vpop.xlane.xlu0 %200
        %v202 = vrot.slane %v201, 4
        %v203 = vadd.f32 %v201, %v202
        %v204 = vrot.slane %v203, 2
        %v205 = vadd.f32 %v203, %v204
        %v206 = vrot.slane %v205, 1
        %v207 = vadd.f32 %v205, %v206
        %s208 = vtos %v207
        %v209 = vstv %s208
        %v210 = vadd.f32 %v197, %v209
        %vm211 = vcmask 0
        %212 = vst.msk [vmem:[#allocation2] sm:$0x1] %vm211, %v210
        // Predicated region
        $region37: #{tpu_custom_call.1} parent=27 // pred_check
          %p213 = pneg %p174
        $region38: #{tpu_custom_call.1} parent=27 // pred_check_branch
          %215 = sbr.rel (%p213) target = $region40
        $region39: #{tpu_custom_call.1} parent=27 // pred_region
          %v216 = vld [vmem:[#allocation2] sm:$0x1]
          %217 = vst.msk [vmem:[%s173] sm:$0x1] %vm211, %v216
        $region40: #{tpu_custom_call.1} parent=27 // pred_fallthru
          _
        %p218 = scmp.lt.s32.totalorder %s21, 1
        %s219 = scalar_select %p218, %s21, 1
        %s220 = scalar_lea.vmem %s2, %s219
        // Predicated region
        $region41: #{tpu_custom_call.1} parent=27 // pred_check
          %p221 = pneg %p96
        $region42: #{tpu_custom_call.1} parent=27 // pred_check_branch
          %223 = sbr.rel (%p221) target = $region44
        $region43: #{tpu_custom_call.1} parent=27 // pred_region
          _
        $region44: #{tpu_custom_call.1} parent=27 // pred_fallthru
          _
      $region28: #{tpu_custom_call.1} parent=5 // pred_fallthru
        _
      %p224 = scmp.le.s32.totalorder 2, %s12
      // Predicated region
      $region45: #{tpu_custom_call.1} parent=5 // pred_check
        %p225 = pneg %p224
      $region46: #{tpu_custom_call.1} parent=5 // pred_check_branch
        %227 = sbr.rel (%p225) target = $region48
      $region47: #{tpu_custom_call.1} parent=5 // pred_region
        %s228 = ssub.s32 %s12, 2
        // Predicated region
        $region49: #{tpu_custom_call.1} parent=47 // pred_check
          %p229 = pneg %p102
        $region50: #{tpu_custom_call.1} parent=47 // pred_check_branch
          %231 = sbr.rel (%p229) target = $region52
        $region51: #{tpu_custom_call.1} parent=47 // pred_region
          %p232 = scmp.lt.s32.totalorder %s23, 1
          %s233 = scalar_select %p232, %s23, 1
          %s234 = scalar_lea.vmem %s2, %s233
        $region52: #{tpu_custom_call.1} parent=47 // pred_fallthru
          _
      $region48: #{tpu_custom_call.1} parent=5 // pred_fallthru
        _
    $region6: #{tpu_custom_call.1} parent=1 // loop_footer
      %s16 = sadd.s32 1, %s12
    $region7: #{tpu_custom_call.1} parent=1 // loop_footer_branch
      %11 = sbr.rel target = $region3
    $region8: #{tpu_custom_call.1} parent=1 // loop_exit
      _
    %235 = vsyncpa [#allocation5], 1
    %s236 = scalar_lea.sflag [#allocation5], 1
    %237 = vsyncpa %s236, 1

</llo_original>
